<compile_context>
chip_gen: v7x
topology: tpu7x:2x2x1
jax: 0.10.0
libtpu: 0.0.40
codegen_flags: <defaults>
</compile_context>

<pallas_src>
import functools

import numpy as np
import jax
import jax.numpy as jnp
from jax.experimental import pallas as pl
from jax.experimental.pallas import tpu as pltpu


# ----------------------------------------------------------------------------
# PIL-compatible bicubic interpolation weights (a = -0.5, support = 2)
# ----------------------------------------------------------------------------
def _pil_bicubic_weights(in_size: int, out_size: int) -> np.ndarray:
    a = -0.5

    def cubic(x):
        x = abs(x)
        if x < 1.0:
            return ((a + 2.0) * x - (a + 3.0)) * x * x + 1.0
        if x < 2.0:
            return (((x - 5.0) * x + 8.0) * x - 4.0) * a
        return 0.0

    scale = in_size / out_size
    filterscale = max(scale, 1.0)
    support = 2.0 * filterscale
    ss = 1.0 / filterscale

    W = np.zeros((out_size, in_size), dtype=np.float64)
    for xx in range(out_size):
        center = (xx + 0.5) * scale
        xmin = max(0, int(center - support + 0.5))
        xmax = min(in_size, int(center + support + 0.5)) - xmin
        k = []
        ww = 0.0
        for j in range(xmax):
            w = cubic((j + xmin - center + 0.5) * ss)
            k.append(w)
            ww += w
        for j in range(xmax):
            W[xx, xmin + j] = k[j] / ww
    return W.astype(np.float32)


def _round_up(x: int, m: int) -> int:
    return ((x + m - 1) // m) * m


def _cdiv(a: int, b: int) -> int:
    return -(-a // b)


def _choose_tile(out_size: int, target: int, granule: int):
    """Balanced tile size (multiple of `granule`) minimizing final-tile padding."""
    n = max(1, _cdiv(out_size, target))
    t = _round_up(_cdiv(out_size, n), granule)
    return t, n, n * t


def _band_limits(w_pad: np.ndarray, tile: int, n_tiles: int,
                 pad_in: int, granule: int):
    """Per output tile, the contiguous input support [start, start + kb)."""
    lo = np.zeros(n_tiles, np.int64)
    hi = np.zeros(n_tiles, np.int64)
    for t in range(n_tiles):
        blk = w_pad[t * tile:(t + 1) * tile]
        nz = np.nonzero(np.any(blk != 0.0, axis=0))[0]
        if nz.size:
            lo[t] = int(nz[0])
            hi[t] = int(nz[-1]) + 1
    max_band = max(int((hi - lo).max()), 1)
    kb = int(min(pad_in, _round_up(max_band, granule)))
    start = np.clip(lo, 0, pad_in - kb).astype(np.int32)
    return start, kb


# ----------------------------------------------------------------------------
# Fused kernel: one output tile per grid point, both matmuls band-contracted.
# ----------------------------------------------------------------------------
def _bicubic_kernel(a_ref, x_ref, b_ref, o_ref):
    # (TM, KH) @ (KH, KW) -> f32 (TM, KW)
    tmp = jnp.dot(a_ref[...], x_ref[...], preferred_element_type=jnp.float32)
    # (TM, KW) @ (KW, TN) -> f32 (TM, TN)
    o_ref[...] = jnp.dot(tmp.astype(b_ref.dtype), b_ref[...],
                         preferred_element_type=jnp.float32)


# ----------------------------------------------------------------------------
# Cached per-(H_in, W_in, scale) plan: weights, banding tables, pallas callable
# ----------------------------------------------------------------------------
@functools.lru_cache(maxsize=None)
def _build_resize_fn(h_in: int, w_in: int, scale: float, use_bf16: bool = False):
    h_out = int(h_in * scale)   # matches torch module's int() truncation
    w_out = int(w_in * scale)

    wh = _pil_bicubic_weights(h_in, h_out)     # (Ho, Hi)
    ww = _pil_bicubic_weights(w_in, w_out)     # (Wo, Wi)

    # ---- per-generation targets ----
    try:
        cap = int(pltpu.get_tpu_info().vmem_capacity_bytes)
    except Exception:  # pragma: no cover - conservative fallback
        cap = 64 * 1024 * 1024
    target_tm = 512 if cap >= (96 << 20) else 256    # v5e/v6e vs v7x
    target_tn = 512

    # ---- output tiling (lane-dense TN, sublane-aligned TM, minimal padding) --
    tm, nrt, ho_pad = _choose_tile(h_out, target_tm, 8)
    tn, nct, wo_pad = _choose_tile(w_out, target_tn, 128)

    hi_pad = _round_up(h_in, 8)
    wi_pad = _round_up(w_in, 128)

    wh_pad = np.zeros((ho_pad, hi_pad), np.float32)
    wh_pad[:h_out, :h_in] = wh
    ww_pad = np.zeros((wo_pad, wi_pad), np.float32)
    ww_pad[:w_out, :w_in] = ww
    ww_t_pad = ww_pad.T.copy()                        # (Wi_pad, Wo_pad)

    # ---- 2-D banding tables ----
    r0, kh = _band_limits(wh_pad, tm, nrt, hi_pad, 8)      # rows of X
    c0, kw = _band_limits(ww_pad, tn, nct, wi_pad, 128)    # cols of X

    # banded height weights A: row tile i -> wh[i*tm:(i+1)*tm, r0[i]:r0[i]+kh]
    a_band = np.zeros((ho_pad, kh), np.float32)
    for i in range(nrt):
        a_band[i * tm:(i + 1) * tm] = wh_pad[i * tm:(i + 1) * tm,
                                             r0[i]:r0[i] + kh]

    # banded width weights B (stacked): col tile j -> W_w^T[c0[j]:c0[j]+kw, j*tn:(j+1)*tn]
    b_band = np.zeros((nct * kw, tn), np.float32)
    for j in range(nct):
        b_band[j * kw:(j + 1) * kw] = ww_t_pad[c0[j]:c0[j] + kw,
                                               j * tn:(j + 1) * tn]

    in_dtype = jnp.bfloat16 if use_bf16 else jnp.float32
    isz = 2 if use_bf16 else 4
    a_dev = jnp.asarray(a_band, dtype=in_dtype)
    b_dev = jnp.asarray(b_band, dtype=in_dtype)

    # ---- compiler hints ----
    flops = int(nrt * nct * (2 * tm * kh * kw + 2 * tm * kw * tn))
    bytes_accessed = int(isz * (nct * a_band.size + nrt * kh * nct * kw
                                + b_band.size)
                         + 4 * ho_pad * wo_pad)
    est_vmem = (isz * (2 * tm * kh + 2 * kh * kw + 2 * kw * tn)
                + 4 * (2 * tm * tn)          # double-buffered f32 output
                + 4 * tm * kw)               # in-kernel f32 intermediate
    vmem_limit = int(min(max(2 * est_vmem, 32 << 20),
                         max(cap - (16 << 20), 32 << 20)))

    # grid = (column tiles, row tiles): inner (row) axis reuses the B block.
    grid_spec = pltpu.PrefetchScalarGridSpec(
        num_scalar_prefetch=0,
        grid=(nct, nrt),
        in_specs=[
            pl.BlockSpec((tm, kh), lambda j, i: (i, 0)),   # A band (row tile)
            pl.BlockSpec((kh, kw), lambda j, i: (i, j)),   # X band (i, j)
            pl.BlockSpec((kw, tn), lambda j, i: (j, 0)),   # B band (col tile)
        ],
        out_specs=pl.BlockSpec((tm, tn), lambda j, i: (i, j)),
    )

    resize = pl.pallas_call(
        _bicubic_kernel,
        out_shape=jax.ShapeDtypeStruct((ho_pad, wo_pad), jnp.float32),
        grid_spec=grid_spec,
        compiler_params=pltpu.CompilerParams(
            dimension_semantics=("parallel", "parallel"),
            vmem_limit_bytes=vmem_limit),
        cost_estimate=pl.CostEstimate(flops=flops, transcendentals=0,
                                      bytes_accessed=bytes_accessed),
    )

    r0_py = [int(v) for v in r0]
    c0_py = [int(v) for v in c0]

    def _fn(x2d):
        xp = jnp.pad(x2d.astype(in_dtype),
                     ((0, hi_pad - h_in), (0, wi_pad - w_in)))
        # Static 2-D band gather (layout plumbing; fused/cheap in XLA).
        if nrt > 1:
            xr = jnp.concatenate([xp[r0_py[i]:r0_py[i] + kh, :]
                                  for i in range(nrt)], axis=0)
        else:
            xr = xp[r0_py[0]:r0_py[0] + kh, :]
        if nct > 1:
            xb = jnp.concatenate([xr[:, c0_py[j]:c0_py[j] + kw]
                                  for j in range(nct)], axis=1)
        else:
            xb = xr[:, c0_py[0]:c0_py[0] + kw]
        out = resize(a_dev, xb, b_dev)
        return out[:h_out, :w_out]

    return jax.jit(_fn)


def bicubic_interpolate(x: jax.Array, scale: float,
                        use_bf16: bool = False) -> jax.Array:
    """Pallas equivalent of BICUBIC.forward: squeeze -> PIL bicubic resize."""
    x2d = jnp.squeeze(x)
    assert x2d.ndim == 2, "module squeezes to a single 2-D image"
    h_in, w_in = int(x2d.shape[0]), int(x2d.shape[1])
    return _build_resize_fn(h_in, w_in, float(scale), bool(use_bf16))(x2d)


# ----------------------------------------------------------------------------
# Module wrapper (dummy conv params exist in the torch module but are unused)
# ----------------------------------------------------------------------------
class BicubicPallas:
    def __init__(self, scale: float, use_bf16: bool = False):
        self.scale = float(scale)
        self.use_bf16 = bool(use_bf16)   # opt-in MXU bf16 path (precision tradeoff)
        # `self.dummy = nn.Conv2d(1, 1, 3)` — never used in forward();
        # deterministic placeholders kept for parameter parity.
        k = jax.random.PRNGKey(42)
        kw_, kb_ = jax.random.split(k)
        bound = 1.0 / np.sqrt(9.0)
        self.dummy_weight = jax.random.uniform(kw_, (1, 1, 3, 3), jnp.float32,
                                               -bound, bound)
        self.dummy_bias = jax.random.uniform(kb_, (1,), jnp.float32,
                                             -bound, bound)
        # TODO(synk): torchvision `transforms.Compose(...Resize(1024)...)` is
        # never invoked in forward(); not reproduced.

    def __call__(self, x):
        return bicubic_interpolate(x, self.scale, self.use_bf16)


if __name__ == "__main__":
    key = jax.random.PRNGKey(0)
    # forward() squeezes to a single 2-D image, so use (1, 1, 16, 16) NCHW.
    x = jax.random.normal(key, (1, 1, 16, 16), dtype=jnp.float32)

    model = BicubicPallas(scale=2.0)
    out = jax.block_until_ready(model(x))
    assert out.shape == (32, 32) and out.dtype == jnp.float32

    # Sanity check vs. a dense separable reference (same PIL weights, XLA).
    wh_ref = jnp.asarray(_pil_bicubic_weights(16, 32))
    ww_ref = jnp.asarray(_pil_bicubic_weights(16, 32))
    ref = wh_ref @ jnp.squeeze(x) @ ww_ref.T
    assert float(jnp.max(jnp.abs(out - ref))) < 1e-4

    # Multi-tile sanity check (exercises 2-D banding and the parallel grid).
    x2 = jax.random.normal(jax.random.PRNGKey(0), (1, 1, 272, 272),
                           dtype=jnp.float32)
    out2 = jax.block_until_ready(bicubic_interpolate(x2, 2.0))
    assert out2.shape == (544, 544) and out2.dtype == jnp.float32
    w2 = jnp.asarray(_pil_bicubic_weights(272, 544))
    ref2 = w2 @ jnp.squeeze(x2) @ w2.T
    assert float(jnp.max(jnp.abs(out2 - ref2))) < 1e-3

    print("KERNEL_OK")
</pallas_src>

<mosaic_0001>
module attributes {stable_mosaic.version = 11 : i64} {
  func.func @_bicubic_kernel(%arg0: i32, %arg1: i32, %arg2: memref<32x16xf32, #tpu.memory_space<vmem>>, %arg3: memref<16x128xf32, #tpu.memory_space<vmem>>, %arg4: memref<128x128xf32, #tpu.memory_space<vmem>>, %arg5: memref<32x128xf32, #tpu.memory_space<vmem>>) attributes {dimension_semantics = [#tpu.dimension_semantics<parallel>, #tpu.dimension_semantics<parallel>], iteration_bounds = array<i64: 1, 1>, scalar_prefetch = 0 : i64, scratch_operands = 0 : i64, tpu.core_type = #tpu.core_type<tc>, window_params = [{transform_indices = @transform_0, window_bounds = array<i64: 32, 16>}, {transform_indices = @transform_1, window_bounds = array<i64: 16, 128>}, {transform_indices = @transform_2, window_bounds = array<i64: 128, 128>}, {transform_indices = @transform_3, window_bounds = array<i64: 32, 128>}]} {
    %c0 = arith.constant 0 : index
    %c0_0 = arith.constant 0 : index
    %0 = vector.load %arg2[%c0, %c0_0] : memref<32x16xf32, #tpu.memory_space<vmem>>, vector<32x16xf32>
    %c0_1 = arith.constant 0 : index
    %c0_2 = arith.constant 0 : index
    %1 = vector.load %arg3[%c0_1, %c0_2] : memref<16x128xf32, #tpu.memory_space<vmem>>, vector<16x128xf32>
    %cst = arith.constant dense<0.000000e+00> : vector<32x128xf32>
    %2 = tpu.matmul %0, %1, %cst {dimension_numbers = #tpu.dot_dimension_numbers<[1], [0], [0], [1], [0, 0, 1, 1], [], []>} : vector<32x16xf32>, vector<16x128xf32>, vector<32x128xf32> -> vector<32x128xf32>
    %c0_3 = arith.constant 0 : index
    %c0_4 = arith.constant 0 : index
    %3 = vector.load %arg4[%c0_3, %c0_4] : memref<128x128xf32, #tpu.memory_space<vmem>>, vector<128x128xf32>
    %cst_5 = arith.constant dense<0.000000e+00> : vector<32x128xf32>
    %4 = tpu.matmul %2, %3, %cst_5 {dimension_numbers = #tpu.dot_dimension_numbers<[1], [0], [0], [1], [0, 0, 1, 1], [], []>} : vector<32x128xf32>, vector<128x128xf32>, vector<32x128xf32> -> vector<32x128xf32>
    %c0_6 = arith.constant 0 : index
    %c0_7 = arith.constant 0 : index
    %5 = vector.load %arg5[%c0_6, %c0_7] : memref<32x128xf32, #tpu.memory_space<vmem>>, vector<32x128xf32>
    tpu.vector_store %arg5[%c0_6, %c0_7], %4 {strides = array<i32>} : memref<32x128xf32, #tpu.memory_space<vmem>>, vector<32x128xf32>,
    return
  }
  func.func @transform_0(%arg0: i32, %arg1: i32) -> (i32, i32) {
    %c0_i32 = arith.constant 0 : i32
    %c0_i32_0 = arith.constant 0 : i32
    return %arg1, %c0_i32 : i32, i32
  }
  func.func @transform_1(%arg0: i32, %arg1: i32) -> (i32, i32) {
    %c0_i32 = arith.constant 0 : i32
    return %arg1, %arg0 : i32, i32
  }
  func.func @transform_2(%arg0: i32, %arg1: i32) -> (i32, i32) {
    %c0_i32 = arith.constant 0 : i32
    %c0_i32_0 = arith.constant 0 : i32
    return %arg0, %c0_i32 : i32, i32
  }
  func.func @transform_3(%arg0: i32, %arg1: i32) -> (i32, i32) {
    %c0_i32 = arith.constant 0 : i32
    return %arg1, %arg0 : i32, i32
  }
}

</mosaic_0001>

<llo_original>
// kernel: _fn.1
$region0: #{_fn.1}
  #allocation0 [shape = 'u32[]', space=smem, size = 0x4, offset = 0x4, fixed_abs, tag = 'smem constant byte address 0x4 - core index']
  #allocation1 [shape = 'u32[144,128]{1,0:T(1,128)}', space=vmem, size = 0x12000, scoped, tag = 'internal scratch']
  %s0 = inlined_call_operand.vmem [shape: f32[32,16], index: 0, kind: input, shape index: {}]
  %s1 = inlined_call_operand.vmem [shape: f32[16,128], index: 1, kind: input, shape index: {}]
  %s2 = inlined_call_operand.hbm [shape: f32[128,128], index: 2, kind: input, shape index: {}]
  %s3 = inlined_call_operand.hbm [shape: f32[32,128], index: 3, kind: output, shape index: {}]
  %s4 = sld [smem:[#allocation0]]
  $region26: #{_fn.1} parent=0
    _
  %s6 = ssub.s32 1, %s4
  %s7 = scalar_select 0, %s6, %s4
  $region1: #{_fn.1} parent=0
    #allocation2 [shape = 'u8[65536]{0}', space=vmem, size = 0x10000, scoped, tag = 'input window, operand 2, single buffered']
    #allocation3 [shape = 's32[1]{0}', space=sflag, size = 0x4, scoped, tag = 'scoped memory for _fn.1']
    #allocation4 [shape = 's32[1]{0}', space=sflag, size = 0x4, scoped, tag = 'scoped memory for _fn.1']
    #allocation5 [shape = 'u8[16384]{0}', space=vmem, size = 0x4000, scoped, tag = 'output window, operand 0, single buffered']
    %8 = vsyncpa [#allocation3], 0
    %9 = vsyncpa [#allocation4], 0
    // Predicated region
    $region2: #{_fn.1} parent=1 // pred_check
      _
    $region3: #{_fn.1} parent=1 // pred_check_branch
      %11 = sbr.rel (0) target = $region5
    $region4: #{_fn.1} parent=1 // pred_region
      _
    $region5: #{_fn.1} parent=1 // pred_fallthru
      _
    // Predicated region
    $region6: #{_fn.1} parent=1 // pred_check
      _
    $region7: #{_fn.1} parent=1 // pred_check_branch
      %13 = sbr.rel (0) target = $region9
    $region8: #{_fn.1} parent=1 // pred_region
      _
    $region9: #{_fn.1} parent=1 // pred_fallthru
      _
    // Predicated region
    $region10: #{_fn.1} parent=1 // pred_check
      _
    $region11: #{_fn.1} parent=1 // pred_check_branch
      %15 = sbr.rel (0) target = $region13
    $region12: #{_fn.1} parent=1 // pred_region
      %s17 = ssub.s32 2048, 2048
      %18 = vsyncadd [#allocation3], %s17
      %s19 = sshll.u32 [#allocation2], 4
      %s20 = int_to_ptr.vmem [resolvable:$true] %s19
      %25 = dma.hbm_to_vmem [thread:$0]  %s2, 2048, %s20, [#allocation3], 128, 128, 8
    $region13: #{_fn.1} parent=1 // pred_fallthru
      _
    // Predicated region
    $region14: #{_fn.1} parent=1 // pred_check
      _
    $region15: #{_fn.1} parent=1 // pred_check_branch
      %27 = sbr.rel (0) target = $region17
    $region16: #{_fn.1} parent=1 // pred_region
      %28 = dma.done [#allocation3], 2048
    $region17: #{_fn.1} parent=1 // pred_fallthru
      _
    %v29 = vld [vmem:[%s0] sm:$0xff]
    %v30 = vld [vmem:[%s0 + $0x8] sm:$0xff]
    %v31 = vld [vmem:[%s0 + $0x10] sm:$0xff]
    %v32 = vld [vmem:[%s0 + $0x18] sm:$0xff]
    %v33 = vld [vmem:[%s1] sm:$0xff]
    %v34 = vld [vmem:[%s1 + $0x8] sm:$0xff]
    %vm35 = vcmask 130048
    %v37 = vsel %vm35, %v29, 0
    %v40 = vsel %vm35, %v30, 0
    %v43 = vsel %vm35, %v31, 0
    %v46 = vsel %vm35, %v32, 0
    %48 = vmatprep.subr.mxu0 0.0
    %49 = vmatpush1.msra.mxu0 %v33
    %50 = vmatprep.subr.mxu0 0.0
    %51 = vmatpush1.msra.mxu0 %v34
    %52 = vmatprep.subr.mxu0 0.0
    %53 = vmatpush1.msra.mxu0 0.0
    %54 = vmatprep.subr.mxu0 0.0
    %55 = vmatpush1.msra.mxu0 0.0
    %56 = vmatprep.subr.mxu0 0.0
    %57 = vmatpush1.msra.mxu0 0.0
    %58 = vmatprep.subr.mxu0 0.0
    %59 = vmatpush1.msra.mxu0 0.0
    %60 = vmatprep.subr.mxu0 0.0
    %61 = vmatpush1.msra.mxu0 0.0
    %62 = vmatprep.subr.mxu0 0.0
    %63 = vmatpush1.msra.mxu0 0.0
    %64 = vmatprep.subr.mxu0 0.0
    %65 = vmatpush1.msra.mxu0 0.0
    %66 = vmatprep.subr.mxu0 0.0
    %67 = vmatpush1.msra.mxu0 0.0
    %68 = vmatprep.subr.mxu0 0.0
    %69 = vmatpush1.msra.mxu0 0.0
    %70 = vmatprep.subr.mxu0 0.0
    %71 = vmatpush1.msra.mxu0 0.0
    %72 = vmatprep.subr.mxu0 0.0
    %73 = vmatpush1.msra.mxu0 0.0
    %74 = vmatprep.subr.mxu0 0.0
    %75 = vmatpush1.msra.mxu0 0.0
    %76 = vmatprep.subr.mxu0 0.0
    %77 = vmatpush1.msra.mxu0 0.0
    %78 = vmatprep.subr.mxu0 0.0
    %79 = vmatpush1.msra.mxu0 0.0
    %80 = vmatprep.subr.mxu0 0.0
    %81 = vmatpush1.msra.mxu0 0.0
    %82 = vmatprep.subr.mxu0 0.0
    %83 = vmatpush1.msra.mxu0 0.0
    %84 = vmatprep.subr.mxu0 0.0
    %85 = vmatpush1.msra.mxu0 0.0
    %86 = vmatprep.subr.mxu0 0.0
    %87 = vmatpush1.msra.mxu0 0.0
    %88 = vmatprep.subr.mxu0 0.0
    %89 = vmatpush1.msra.mxu0 0.0
    %90 = vmatprep.subr.mxu0 0.0
    %91 = vmatpush1.msra.mxu0 0.0
    %92 = vmatprep.subr.mxu0 0.0
    %93 = vmatpush1.msra.mxu0 0.0
    %94 = vmatprep.subr.mxu0 0.0
    %95 = vmatpush1.msra.mxu0 0.0
    %96 = vmatprep.subr.mxu0 0.0
    %97 = vmatpush1.msra.mxu0 0.0
    %98 = vmatprep.subr.mxu0 0.0
    %99 = vmatpush1.msra.mxu0 0.0
    %100 = vmatprep.subr.mxu0 0.0
    %101 = vmatpush1.msra.mxu0 0.0
    %102 = vmatprep.subr.mxu0 0.0
    %103 = vmatpush1.msra.mxu0 0.0
    %104 = vmatprep.subr.mxu0 0.0
    %105 = vmatpush1.msra.mxu0 0.0
    %106 = vmatprep.subr.mxu0 0.0
    %107 = vmatpush1.msra.mxu0 0.0
    %108 = vmatprep.subr.mxu0 0.0
    %109 = vmatpush1.msra.mxu0 0.0
    %110 = vmatprep.subr.mxu0 0.0
    %111 = vmatpush1.msra.mxu0 0.0
    %112 = vmatprep.mubr.f32.mxu0 0.0
    %113 = vmatmul.mubr.f32.gmra.mrb[0].mxu0 %v37
    %v114 = vpop.f32.mrb[0].mxu0
    %v115 = vadd.f32 0.0, %v114
    %v116 = vpop.f32.mrb[0].mxu0
    %117 = vmatprep.mubr.f32.mxu0 0.0
    %118 = vmatmul.mubr.f32.gmra.mrb[0].mxu0 %v40
    %v119 = vpop.f32.mrb[0].mxu0
    %v120 = vadd.f32 0.0, %v119
    %v121 = vpop.f32.mrb[0].mxu0
    %122 = vmatprep.mubr.f32.mxu0 0.0
    %123 = vmatmul.mubr.f32.gmra.mrb[0].mxu0 %v43
    %v124 = vpop.f32.mrb[0].mxu0
    %v125 = vadd.f32 0.0, %v124
    %v126 = vpop.f32.mrb[0].mxu0
    %127 = vmatprep.mubr.f32.mxu0 0.0
    %128 = vmatmul.mubr.f32.gmra.mrb[0].mxu0 %v46
    %v129 = vpop.f32.mrb[0].mxu0
    %v130 = vadd.f32 0.0, %v129
    %v131 = vpop.f32.mrb[0].mxu0
    %132 = vdwg.mxu0
    %v133 = vld [vmem:[#allocation2] sm:$0xff]
    %v134 = vld [vmem:[#allocation2 + $0x8] sm:$0xff]
    %v135 = vld [vmem:[#allocation2 + $0x10] sm:$0xff]
    %v136 = vld [vmem:[#allocation2 + $0x18] sm:$0xff]
    %v137 = vld [vmem:[#allocation2 + $0x20] sm:$0xff]
    %v138 = vld [vmem:[#allocation2 + $0x28] sm:$0xff]
    %v139 = vld [vmem:[#allocation2 + $0x30] sm:$0xff]
    %v140 = vld [vmem:[#allocation2 + $0x38] sm:$0xff]
    %v141 = vld [vmem:[#allocation2 + $0x40] sm:$0xff]
    %v142 = vld [vmem:[#allocation2 + $0x48] sm:$0xff]
    %v143 = vld [vmem:[#allocation2 + $0x50] sm:$0xff]
    %v144 = vld [vmem:[#allocation2 + $0x58] sm:$0xff]
    %v145 = vld [vmem:[#allocation2 + $0x60] sm:$0xff]
    %v146 = vld [vmem:[#allocation2 + $0x68] sm:$0xff]
    %v147 = vld [vmem:[#allocation2 + $0x70] sm:$0xff]
    %v148 = vld [vmem:[#allocation2 + $0x78] sm:$0xff]
    %149 = vmatprep.subr.mxu0 0.0
    %150 = vmatpush1.msra.mxu0 %v133
    %151 = vmatprep.subr.mxu0 0.0
    %152 = vmatpush1.msra.mxu0 %v134
    %153 = vmatprep.subr.mxu0 0.0
    %154 = vmatpush1.msra.mxu0 %v135
    %155 = vmatprep.subr.mxu0 0.0
    %156 = vmatpush1.msra.mxu0 %v136
    %157 = vmatprep.subr.mxu0 0.0
    %158 = vmatpush1.msra.mxu0 %v137
    %159 = vmatprep.subr.mxu0 0.0
    %160 = vmatpush1.msra.mxu0 %v138
    %161 = vmatprep.subr.mxu0 0.0
    %162 = vmatpush1.msra.mxu0 %v139
    %163 = vmatprep.subr.mxu0 0.0
    %164 = vmatpush1.msra.mxu0 %v140
    %165 = vmatprep.subr.mxu0 0.0
    %166 = vmatpush1.msra.mxu0 %v141
    %167 = vmatprep.subr.mxu0 0.0
    %168 = vmatpush1.msra.mxu0 %v142
    %169 = vmatprep.subr.mxu0 0.0
    %170 = vmatpush1.msra.mxu0 %v143
    %171 = vmatprep.subr.mxu0 0.0
    %172 = vmatpush1.msra.mxu0 %v144
    %173 = vmatprep.subr.mxu0 0.0
    %174 = vmatpush1.msra.mxu0 %v145
    %175 = vmatprep.subr.mxu0 0.0
    %176 = vmatpush1.msra.mxu0 %v146
    %177 = vmatprep.subr.mxu0 0.0
    %178 = vmatpush1.msra.mxu0 %v147
    %179 = vmatprep.subr.mxu0 0.0
    %180 = vmatpush1.msra.mxu0 %v148
    %181 = vmatprep.subr.mxu0 0.0
    %182 = vmatpush1.msra.mxu0 0.0
    %183 = vmatprep.subr.mxu0 0.0
    %184 = vmatpush1.msra.mxu0 0.0
    %185 = vmatprep.subr.mxu0 0.0
    %186 = vmatpush1.msra.mxu0 0.0
    %187 = vmatprep.subr.mxu0 0.0
    %188 = vmatpush1.msra.mxu0 0.0
    %189 = vmatprep.subr.mxu0 0.0
    %190 = vmatpush1.msra.mxu0 0.0
    %191 = vmatprep.subr.mxu0 0.0
    %192 = vmatpush1.msra.mxu0 0.0
    %193 = vmatprep.subr.mxu0 0.0
    %194 = vmatpush1.msra.mxu0 0.0
    %195 = vmatprep.subr.mxu0 0.0
    %196 = vmatpush1.msra.mxu0 0.0
    %197 = vmatprep.subr.mxu0 0.0
    %198 = vmatpush1.msra.mxu0 0.0
    %199 = vmatprep.subr.mxu0 0.0
    %200 = vmatpush1.msra.mxu0 0.0
    %201 = vmatprep.subr.mxu0 0.0
    %202 = vmatpush1.msra.mxu0 0.0
    %203 = vmatprep.subr.mxu0 0.0
    %204 = vmatpush1.msra.mxu0 0.0
    %205 = vmatprep.subr.mxu0 0.0
    %206 = vmatpush1.msra.mxu0 0.0
    %207 = vmatprep.subr.mxu0 0.0
    %208 = vmatpush1.msra.mxu0 0.0
    %209 = vmatprep.subr.mxu0 0.0
    %210 = vmatpush1.msra.mxu0 0.0
    %211 = vmatprep.subr.mxu0 0.0
    %212 = vmatpush1.msra.mxu0 0.0
    %213 = vmatprep.mubr.f32.mxu0 0.0
    %214 = vmatmul.mubr.f32.gmra.mrb[0].mxu0 %v115
    %v215 = vpop.f32.mrb[0].mxu0
    %v216 = vadd.f32 0.0, %v215
    %v217 = vpop.f32.mrb[0].mxu0
    %218 = vmatprep.mubr.f32.mxu0 0.0
    %219 = vmatmul.mubr.f32.gmra.mrb[0].mxu0 %v120
    %v220 = vpop.f32.mrb[0].mxu0
    %v221 = vadd.f32 0.0, %v220
    %v222 = vpop.f32.mrb[0].mxu0
    %223 = vmatprep.mubr.f32.mxu0 0.0
    %224 = vmatmul.mubr.f32.gmra.mrb[0].mxu0 %v125
    %v225 = vpop.f32.mrb[0].mxu0
    %v226 = vadd.f32 0.0, %v225
    %v227 = vpop.f32.mrb[0].mxu0
    %228 = vmatprep.mubr.f32.mxu0 0.0
    %229 = vmatmul.mubr.f32.gmra.mrb[0].mxu0 %v130
    %v230 = vpop.f32.mrb[0].mxu0
    %v231 = vadd.f32 0.0, %v230
    %v232 = vpop.f32.mrb[0].mxu0
    %233 = vdwg.mxu0
    %234 = vst [vmem:[#allocation5] sm:$0xff] %v216
    %235 = vst [vmem:[#allocation5 + $0x8] sm:$0xff] %v221
    %236 = vst [vmem:[#allocation5 + $0x10] sm:$0xff] %v226
    %237 = vst [vmem:[#allocation5 + $0x18] sm:$0xff] %v231
    // Predicated region
    $region18: #{_fn.1} parent=1 // pred_check
      _
    $region19: #{_fn.1} parent=1 // pred_check_branch
      %239 = sbr.rel (0) target = $region21
    $region20: #{_fn.1} parent=1 // pred_region
      %s241 = ssub.s32 512, 512
      %242 = vsyncadd [#allocation4], %s241
      %s243 = sshll.u32 [#allocation5], 4
      %s244 = int_to_ptr.vmem [resolvable:$true] %s243
      %249 = dma.vmem_to_hbm [thread:$0]  %s244, 512, %s3, [#allocation4], 128, 128, 8
    $region21: #{_fn.1} parent=1 // pred_fallthru
      _
    // Predicated region
    $region22: #{_fn.1} parent=1 // pred_check
      _
    $region23: #{_fn.1} parent=1 // pred_check_branch
      %251 = sbr.rel (0) target = $region25
    $region24: #{_fn.1} parent=1 // pred_region
      %252 = dma.done [#allocation4], 512
    $region25: #{_fn.1} parent=1 // pred_fallthru
      _
    %253 = vsyncpa [#allocation3], 1
    %254 = vsyncpa [#allocation4], 1

</llo_original>
